<compile_context>
chip_gen: v6e
topology: v6e:2x2x1
jax: 0.10.0
libtpu: 0.0.40
codegen_flags: <defaults>
</compile_context>

<pallas_src>
import math

import jax
import jax.numpy as jnp
from jax import lax
from jax.experimental import pallas as pl
from jax.experimental.pallas import tpu as pltpu

# Small, TPU-tile-friendly shapes consistent with the module's forward.
B, S, D, N = 1, 128, 256, 512

# Row-tile size: TM=64 gives the parallel grid axis extent 2 (both v7x TCs
# get work).  Last two dims of every block are multiples of (8, 128).
TM = 64

INV_SCALE_FACTOR = 1.0 / math.sqrt(D)   # undefined global in the torch snippet
DROPOUT_P = 0.0                          # undefined global; 0.0 -> identity
# TODO(synk): nonzero dropout_p would need pltpu.prng_seed/prng_random_bits
# masking with inverted-dropout scaling (and an RNG-aware reference).


def _fused_attn_kernel(x_ref, w_ref, o_ref):
    """One row tile of softmax((x @ W^T) * s, -1) @ W, single pass over N."""
    # Fold the softmax scale into x (TM*D elements instead of TM*N), then cast
    # to bf16 so both matmuls run at MXU bf16 rate with f32 accumulation.
    x = (x_ref[...] * INV_SCALE_FACTOR).astype(jnp.bfloat16)     # (TM, D)
    w = w_ref[...]                                               # (N, D) bf16

    # qk = x @ W^T expressed as a dot_general contraction on dim 1 of both
    # operands (no transposed copy of W is materialized).
    qk = lax.dot_general(
        x, w, dimension_numbers=(((1,), (1,)), ((), ())),
        preferred_element_type=jnp.float32)                      # (TM, N) f32

    # Single-pass (full-row) softmax: N fits in one tile, no recurrence.
    m = jnp.max(qk, axis=-1, keepdims=True)                      # (TM, 1)
    p = jnp.exp(qk - m)                                          # (TM, N) f32
    l = jnp.sum(p, axis=-1, keepdims=True)                       # (TM, 1)

    # dropout with p == 0.0 is the identity (inverted-dropout scale == 1.0).

    # Second matmul on un-normalized probs; normalize the (TM, D) result
    # (cheaper than normalizing the (TM, N) probs).  EUP vrcp for the denom.
    acc = jnp.dot(p.astype(jnp.bfloat16), w,
                  preferred_element_type=jnp.float32)            # (TM, D) f32
    o_ref[...] = (acc * pl.reciprocal(l, approx=True)).astype(o_ref.dtype)


def model_forward(x1, weight):
    """x1: (B, S, D) f32, weight: (N, D) f32 -> (B, S, D) f32."""
    b, s, d = x1.shape
    n, d2 = weight.shape
    assert d == d2 == D
    M = b * s                              # collapse batch into the row dim
    assert M % TM == 0
    x2d = x1.reshape(M, d)

    # Cast W once here: halves HBM->VMEM DMA bytes and removes the per-step
    # in-kernel cast.  (Same MXU-operand precision as before.)
    w_bf16 = weight.astype(jnp.bfloat16)

    grid = (M // TM,)

    out2d = pl.pallas_call(
        _fused_attn_kernel,
        out_shape=jax.ShapeDtypeStruct((M, d), jnp.float32),
        grid_spec=pltpu.PrefetchScalarGridSpec(
            num_scalar_prefetch=0,
            grid=grid,
            in_specs=[
                pl.BlockSpec((TM, d), lambda i: (i, 0)),   # x row tile
                pl.BlockSpec((n, d), lambda i: (0, 0)),    # full W, resident
            ],
            out_specs=pl.BlockSpec((TM, d), lambda i: (i, 0)),
        ),
        compiler_params=pltpu.CompilerParams(
            dimension_semantics=("parallel",)),
    )(x2d, w_bf16)

    return out2d.reshape(b, s, d)


def _reference(x1, weight):
    # Pure-f32 semantics of the original torch module (dropout_p = 0.0).
    qk = jnp.einsum("bsd,nd->bsn", x1, weight)
    scaled = qk * INV_SCALE_FACTOR
    p = jax.nn.softmax(scaled, axis=-1)
    return jnp.einsum("bsn,nd->bsd", p, weight)


if __name__ == "__main__":
    key = jax.random.PRNGKey(0)
    kx, kw = jax.random.split(key)
    x1 = jax.random.normal(kx, (B, S, D), dtype=jnp.float32)
    weight = jax.random.normal(kw, (N, D), dtype=jnp.float32)

    out = model_forward(x1, weight)
    jax.block_until_ready(out)

    ref = _reference(x1, weight)
    assert out.shape == (B, S, D)
    # bf16 MXU operands + approx reciprocal => loose-but-meaningful tolerance.
    assert jnp.allclose(out, ref, atol=2e-2, rtol=2e-2), "mismatch vs reference"

    print("KERNEL_OK")
</pallas_src>

<mosaic_0001>
module attributes {stable_mosaic.version = 11 : i64} {
  func.func @_fused_attn_kernel(%arg0: i32, %arg1: memref<64x256xf32, #tpu.memory_space<vmem>>, %arg2: memref<512x256xbf16, #tpu.memory_space<vmem>>, %arg3: memref<64x256xf32, #tpu.memory_space<vmem>>) attributes {dimension_semantics = [#tpu.dimension_semantics<parallel>], iteration_bounds = array<i64: 2>, scalar_prefetch = 0 : i64, scratch_operands = 0 : i64, tpu.core_type = #tpu.core_type<tc>, window_params = [{transform_indices = @transform_0, window_bounds = array<i64: 64, 256>}, {pipeline_mode = #tpu.pipeline_mode<synchronous>, transform_indices = @transform_1, window_bounds = array<i64: 512, 256>}, {transform_indices = @transform_2, window_bounds = array<i64: 64, 256>}]} {
    %c0 = arith.constant 0 : index
    %c0_0 = arith.constant 0 : index
    %0 = vector.load %arg1[%c0, %c0_0] : memref<64x256xf32, #tpu.memory_space<vmem>>, vector<64x256xf32>
    %cst = arith.constant 6.250000e-02 : f32
    %1 = vector.broadcast %cst : f32 to vector<64x256xf32>
    %2 = arith.mulf %0, %1 : vector<64x256xf32>
    %3 = arith.truncf %2 : vector<64x256xf32> to vector<64x256xbf16>
    %c0_1 = arith.constant 0 : index
    %c0_2 = arith.constant 0 : index
    %4 = vector.load %arg2[%c0_1, %c0_2] : memref<512x256xbf16, #tpu.memory_space<vmem>>, vector<512x256xbf16>
    %cst_3 = arith.constant dense<0.000000e+00> : vector<64x512xf32>
    %5 = tpu.matmul %3, %4, %cst_3 {dimension_numbers = #tpu.dot_dimension_numbers<[1], [1], [0], [0], [0, 0, 1, 0], [], []>} : vector<64x256xbf16>, vector<512x256xbf16>, vector<64x512xf32> -> vector<64x512xf32>
    %cst_4 = arith.constant dense<0xFF800000> : vector<64xf32>
    %6 = vector.multi_reduction <maximumf>, %5, %cst_4 [1] : vector<64x512xf32> to vector<64xf32>
    %7 = vector.shape_cast %6 : vector<64xf32> to vector<64x1xf32>
    %8 = vector.broadcast %7 : vector<64x1xf32> to vector<64x512xf32>
    %9 = arith.subf %5, %8 : vector<64x512xf32>
    %10 = math.exp %9 : vector<64x512xf32>
    %cst_5 = arith.constant dense<0.000000e+00> : vector<64xf32>
    %11 = vector.multi_reduction <add>, %10, %cst_5 [1] : vector<64x512xf32> to vector<64xf32>
    %12 = vector.shape_cast %11 : vector<64xf32> to vector<64x1xf32>
    %13 = arith.truncf %10 : vector<64x512xf32> to vector<64x512xbf16>
    %cst_6 = arith.constant dense<0.000000e+00> : vector<64x256xf32>
    %14 = tpu.matmul %13, %4, %cst_6 {dimension_numbers = #tpu.dot_dimension_numbers<[1], [0], [0], [1], [0, 0, 1, 1], [], []>} : vector<64x512xbf16>, vector<512x256xbf16>, vector<64x256xf32> -> vector<64x256xf32>
    %15 = tpu.reciprocal %12 {approx = true} : vector<64x1xf32> -> vector<64x1xf32>
    %16 = vector.broadcast %15 : vector<64x1xf32> to vector<64x256xf32>
    %17 = arith.mulf %14, %16 : vector<64x256xf32>
    %c0_7 = arith.constant 0 : index
    %c0_8 = arith.constant 0 : index
    %18 = vector.load %arg3[%c0_7, %c0_8] : memref<64x256xf32, #tpu.memory_space<vmem>>, vector<64x256xf32>
    tpu.vector_store %arg3[%c0_7, %c0_8], %17 {strides = array<i32>} : memref<64x256xf32, #tpu.memory_space<vmem>>, vector<64x256xf32>,
    return
  }
  func.func @transform_0(%arg0: i32) -> (i32, i32) {
    %c0_i32 = arith.constant 0 : i32
    %c0_i32_0 = arith.constant 0 : i32
    return %arg0, %c0_i32 : i32, i32
  }
  func.func @transform_1(%arg0: i32) -> (i32, i32) {
    %c0_i32 = arith.constant 0 : i32
    %c0_i32_0 = arith.constant 0 : i32
    %c0_i32_1 = arith.constant 0 : i32
    return %c0_i32, %c0_i32_0 : i32, i32
  }
  func.func @transform_2(%arg0: i32) -> (i32, i32) {
    %c0_i32 = arith.constant 0 : i32
    %c0_i32_0 = arith.constant 0 : i32
    return %arg0, %c0_i32 : i32, i32
  }
}

</mosaic_0001>

<llo_original>
// kernel: tpu_custom_call.1
$region0: #{tpu_custom_call.1}
  #allocation0 [shape = 'u32[]', space=smem, size = 0x4, offset = 0x4, fixed_abs, tag = 'smem constant byte address 0x4 - core index']
  #allocation1 [shape = 'u32[144,128]{1,0:T(1,128)}', space=vmem, size = 0x12000, scoped, tag = 'internal scratch']
  %s0 = inlined_call_operand.hbm [shape: f32[128,256], index: 0, kind: input, shape index: {}]
  %s1 = inlined_call_operand.hbm [shape: bf16[512,256], index: 1, kind: input, shape index: {}]
  %s2 = inlined_call_operand.hbm [shape: f32[128,256], index: 2, kind: output, shape index: {}]
  %s3 = sld [smem:[#allocation0]]
  $region49: #{tpu_custom_call.1} parent=0
    _
  %s5 = ssub.s32 1, %s3
  %s6 = scalar_select 0, %s5, %s3
  $region1: #{tpu_custom_call.1} parent=0
    #allocation2 [shape = 'u8[131072]{0}', space=vmem, size = 0x20000, scoped, tag = 'input window, operand 0']
    #allocation3 [shape = 's32[2]{0}', space=sflag, size = 0x8, scoped, tag = 'scoped memory for tpu_custom_call.1']
    #allocation4 [shape = 's32[2]{0}', space=sflag, size = 0x8, scoped, tag = 'scoped memory for tpu_custom_call.1']
    #allocation5 [shape = 'u8[262144]{0}', space=vmem, size = 0x40000, scoped, tag = 'input window, operand 1, single buffered']
    #allocation6 [shape = 's32[1]{0}', space=sflag, size = 0x4, scoped, tag = 'scoped memory for tpu_custom_call.1']
    #allocation7 [shape = 'u8[131072]{0}', space=vmem, size = 0x20000, scoped, tag = 'output window, operand 0']
    %7 = vsyncpa [#allocation3], 0
    %s8 = scalar_lea.sflag [#allocation3], 1
    %9 = vsyncpa %s8, 0
    %10 = vsyncpa [#allocation6], 0
    %11 = vsyncpa [#allocation4], 0
    %s12 = scalar_lea.sflag [#allocation4], 1
    %13 = vsyncpa %s12, 0
    loop: start=0, step=1, limit=4
    $region2: #{tpu_custom_call.1} parent=1 // loop_pre_header
      _
    $region3: #{tpu_custom_call.1} parent=1 // loop_header
      %s15 = sphi 0, %s19
      %p16 = scmp.ge.s32.totalorder %s15, 4
      %s25 = sphi 0, %s27
      %s28 = sphi 0, %s25
      %s29 = sphi 0, %s28
      %s45 = sphi 0, %s29
      %s49 = sphi 0, %s49
      %s51 = sphi 0, %s49
      %s52 = sphi 0, %s51
      %s66 = sphi 0, %s52
      %s72 = sphi 0, %s74
      %s75 = sphi 0, %s72
      %s76 = sphi 0, %s75
      %s92 = sphi 0, %s76
    $region4: #{tpu_custom_call.1} parent=1 // loop_header_branch
      %18 = sbr.rel (%p16) target = $region8
    $region5: #{tpu_custom_call.1} parent=1 // loop_body
      %s20 = ssub.s32 %s15, 1
      %s21 = ssub.s32 %s15, 2
      %s22 = sadd.s32 %s15, 1
      %s23 = ssub.s32 %s15, %s22
      %p24 = scmp.eq.s32.totalorder %s23, 0
      %s26 = sadd.s32 %s25, 1
      %s27 = scalar_select %p24, %s25, %s26
      %p30 = pneg %p24
      %p31 = scmp.eq.s32.totalorder %s15, 1
      %p32 = por %p30, %p31
      %p33 = scmp.ne.s32.totalorder %s25, %s28
      %p34 = scmp.eq.s32.totalorder %s15, 0
      %p35 = por %p33, %p34
      %p36 = scmp.ne.s32.totalorder %s25, %s28
      %p37 = scmp.eq.s32.totalorder %s20, 1
      %p38 = por %p36, %p37
      %p39 = scmp.ne.s32.totalorder %s28, %s29
      %p40 = scmp.eq.s32.totalorder %s20, 0
      %p41 = por %p39, %p40
      %p42 = scmp.ne.s32.totalorder %s28, %s29
      %p43 = scmp.eq.s32.totalorder %s21, 1
      %p44 = por %p42, %p43
      %p46 = scmp.ne.s32.totalorder %s29, %s45
      %p47 = scmp.eq.s32.totalorder %s21, 0
      %p48 = por %p46, %p47
      %s50 = sadd.s32 %s49, 1
      %p53 = scmp.eq.s32.totalorder %s15, 1
      %p54 = scmp.ne.s32.totalorder %s49, %s51
      %p55 = scmp.eq.s32.totalorder %s15, 0
      %p56 = por %p54, %p55
      %p57 = scmp.ne.s32.totalorder %s49, %s51
      %p58 = scmp.eq.s32.totalorder %s20, 1
      %p59 = por %p57, %p58
      %p60 = scmp.ne.s32.totalorder %s51, %s52
      %p61 = scmp.eq.s32.totalorder %s20, 0
      %p62 = por %p60, %p61
      %p63 = scmp.ne.s32.totalorder %s51, %s52
      %p64 = scmp.eq.s32.totalorder %s21, 1
      %p65 = por %p63, %p64
      %p67 = scmp.ne.s32.totalorder %s52, %s66
      %p68 = scmp.eq.s32.totalorder %s21, 0
      %p69 = por %p67, %p68
      %s70 = ssub.s32 %s15, %s22
      %p71 = scmp.eq.s32.totalorder %s70, 0
      %s73 = sadd.s32 %s72, 1
      %s74 = scalar_select %p71, %s72, %s73
      %p77 = pneg %p71
      %p78 = scmp.eq.s32.totalorder %s15, 1
      %p79 = por %p77, %p78
      %p80 = scmp.ne.s32.totalorder %s72, %s75
      %p81 = scmp.eq.s32.totalorder %s15, 0
      %p82 = por %p80, %p81
      %p83 = scmp.ne.s32.totalorder %s72, %s75
      %p84 = scmp.eq.s32.totalorder %s20, 1
      %p85 = por %p83, %p84
      %p86 = scmp.ne.s32.totalorder %s75, %s76
      %p87 = scmp.eq.s32.totalorder %s20, 0
      %p88 = por %p86, %p87
      %p89 = scmp.ne.s32.totalorder %s75, %s76
      %p90 = scmp.eq.s32.totalorder %s21, 1
      %p91 = por %p89, %p90
      %p93 = scmp.ne.s32.totalorder %s76, %s92
      %p94 = scmp.eq.s32.totalorder %s21, 0
      %p95 = por %p93, %p94
      %p96 = scmp.le.s32.totalorder 1, %s15
      %p97 = scmp.lt.s32.totalorder %s15, 3
      %p98 = pnand %p96, %p97
      %p99 = pneg %p98
      // Predicated region
      $region9: #{tpu_custom_call.1} parent=5 // pred_check
        _
      $region10: #{tpu_custom_call.1} parent=5 // pred_check_branch
        %101 = sbr.rel (%p98) target = $region12
      $region11: #{tpu_custom_call.1} parent=5 // pred_region
        %s102 = ssub.s32 %s15, 1
        // Predicated region
        $region13: #{tpu_custom_call.1} parent=11 // pred_check
          %p103 = pneg %p62
        $region14: #{tpu_custom_call.1} parent=11 // pred_check_branch
          %105 = sbr.rel (%p103) target = $region16
        $region15: #{tpu_custom_call.1} parent=11 // pred_region
          %s107 = ssub.s32 8192, 8192
          %108 = vsyncadd [#allocation6], %s107
          %s109 = sshll.u32 [#allocation5], 4
          %s110 = int_to_ptr.vmem [resolvable:$true] %s109
          %115 = dma.hbm_to_vmem [thread:$0]  %s1, 8192, %s110, [#allocation6], 128, 128, 8
        $region16: #{tpu_custom_call.1} parent=11 // pred_fallthru
          _
      $region12: #{tpu_custom_call.1} parent=5 // pred_fallthru
        _
      %p116 = scmp.lt.s32.totalorder %s15, 2
      // Predicated region
      $region17: #{tpu_custom_call.1} parent=5 // pred_check
        %p117 = pneg %p116
      $region18: #{tpu_custom_call.1} parent=5 // pred_check_branch
        %119 = sbr.rel (%p117) target = $region20
      $region19: #{tpu_custom_call.1} parent=5 // pred_region
        // Predicated region
        $region21: #{tpu_custom_call.1} parent=19 // pred_check
          %p120 = pneg %p35
        $region22: #{tpu_custom_call.1} parent=19 // pred_check_branch
          %122 = sbr.rel (%p120) target = $region24
        $region23: #{tpu_custom_call.1} parent=19 // pred_region
          %s123 = sand.u32 %s25, 1
          %s124 = scalar_lea.sflag [#allocation3], %s123
          %s125 = sand.u32 %s25, 1
          %s126 = smul.addr %s125, 128
          %s127 = scalar_lea.vmem [#allocation2], %s126
          %s128 = smul.u32 8, %s15
          %s130 = ssub.s32 2048, 2048
          %131 = vsyncadd %s124, %s130
          %s132 = smul.addr %s128, 2
          %s133 = smul.addr %s132, 128
          %s134 = scalar_lea.hbm %s0, %s133
          %s135 = sshll.u32 %s127, 4
          %s136 = int_to_ptr.vmem [resolvable:$true] %s135
          %141 = dma.hbm_to_vmem [thread:$0]  %s134, 2048, %s136, %s124, 256, 256, 16
        $region24: #{tpu_custom_call.1} parent=19 // pred_fallthru
          _
      $region20: #{tpu_custom_call.1} parent=5 // pred_fallthru
        _
      %p142 = scmp.le.s32.totalorder 1, %s15
      %p143 = scmp.lt.s32.totalorder %s15, 3
      %p144 = pnand %p142, %p143
      %p145 = pneg %p144
      // Predicated region
      $region25: #{tpu_custom_call.1} parent=5 // pred_check
        _
      $region26: #{tpu_custom_call.1} parent=5 // pred_check_branch
        %147 = sbr.rel (%p144) target = $region28
      $region27: #{tpu_custom_call.1} parent=5 // pred_region
        %s148 = ssub.s32 %s15, 1
        %s149 = sand.u32 %s28, 1
        %s150 = scalar_lea.sflag [#allocation3], %s149
        %s151 = sand.u32 %s28, 1
        %s152 = smul.addr %s151, 128
        %s153 = scalar_lea.vmem [#allocation2], %s152
        // Predicated region
        $region29: #{tpu_custom_call.1} parent=27 // pred_check
          %p154 = pneg %p41
        $region30: #{tpu_custom_call.1} parent=27 // pred_check_branch
          %156 = sbr.rel (%p154) target = $region32
        $region31: #{tpu_custom_call.1} parent=27 // pred_region
          %157 = dma.done %s150, 2048
        $region32: #{tpu_custom_call.1} parent=27 // pred_fallthru
          _
        // Predicated region
        $region33: #{tpu_custom_call.1} parent=27 // pred_check
          %p158 = pneg %p62
        $region34: #{tpu_custom_call.1} parent=27 // pred_check_branch
          %160 = sbr.rel (%p158) target = $region36
        $region35: #{tpu_custom_call.1} parent=27 // pred_region
          %161 = dma.done [#allocation6], 8192
        $region36: #{tpu_custom_call.1} parent=27 // pred_fallthru
          _
        %s162 = sand.u32 %s28, 1
        %s163 = scalar_lea.sflag [#allocation3], %s162
        %s164 = sand.u32 %s28, 1
        %s165 = smul.addr %s164, 128
        %s166 = scalar_lea.vmem [#allocation2], %s165
        %p167 = pneg %p41
        %p168 = pneg %p38
        %p169 = pneg %p62
        %p170 = pneg %p59
        %p171 = pneg %p88
        %p172 = pneg %p85
        %s173 = sand.u32 %s75, 1
        %s174 = scalar_lea.sflag [#allocation4], %s173
        %s175 = sand.u32 %s75, 1
        %s176 = smul.addr %s175, 128
        %s177 = scalar_lea.vmem [#allocation7], %s176
        %s178 = smul.u32 8, %s20
        %s179 = smul.u32 8, %s20
        %v180 = vld [vmem:[%s153] sm:$0xff]
        %v181 = vld [vmem:[%s153 + $0x8] sm:$0xff]
        %v182 = vld [vmem:[%s153 + $0x10] sm:$0xff]
        %v183 = vld [vmem:[%s153 + $0x18] sm:$0xff]
        %v184 = vld [vmem:[%s153 + $0x20] sm:$0xff]
        %v185 = vld [vmem:[%s153 + $0x28] sm:$0xff]
        %v186 = vld [vmem:[%s153 + $0x30] sm:$0xff]
        %v187 = vld [vmem:[%s153 + $0x38] sm:$0xff]
        %v188 = vld [vmem:[%s153 + $0x40] sm:$0xff]
        %v189 = vld [vmem:[%s153 + $0x48] sm:$0xff]
        %v190 = vld [vmem:[%s153 + $0x50] sm:$0xff]
        %v191 = vld [vmem:[%s153 + $0x58] sm:$0xff]
        %v192 = vld [vmem:[%s153 + $0x60] sm:$0xff]
        %v193 = vld [vmem:[%s153 + $0x68] sm:$0xff]
        %v194 = vld [vmem:[%s153 + $0x70] sm:$0xff]
        %v195 = vld [vmem:[%s153 + $0x78] sm:$0xff]
        %v196 = vmul.f32 %v180, 0.0625
        %v197 = vmul.f32 %v181, 0.0625
        %v198 = vmul.f32 %v182, 0.0625
        %v199 = vmul.f32 %v183, 0.0625
        %v200 = vmul.f32 %v184, 0.0625
        %v201 = vmul.f32 %v185, 0.0625
        %v202 = vmul.f32 %v186, 0.0625
        %v203 = vmul.f32 %v187, 0.0625
        %v204 = vmul.f32 %v188, 0.0625
        %v205 = vmul.f32 %v189, 0.0625
        %v206 = vmul.f32 %v190, 0.0625
        %v207 = vmul.f32 %v191, 0.0625
        %v208 = vmul.f32 %v192, 0.0625
        %v209 = vmul.f32 %v193, 0.0625
        %v210 = vmul.f32 %v194, 0.0625
        %v211 = vmul.f32 %v195, 0.0625
        %v212 = vpack.c.bf16 %v198, %v196
        %v213 = vpack.c.bf16 %v199, %v197
        %v214 = vpack.c.bf16 %v202, %v200
        %v215 = vpack.c.bf16 %v203, %v201
        %v216 = vpack.c.bf16 %v206, %v204
        %v217 = vpack.c.bf16 %v207, %v205
        %v218 = vpack.c.bf16 %v210, %v208
        %v219 = vpack.c.bf16 %v211, %v209
        %v220 = vld [vmem:[#allocation5] sm:$0xff]
        %v221 = vld [vmem:[#allocation5 + $0x8] sm:$0xff]
        %v222 = vld [vmem:[#allocation5 + $0x10] sm:$0xff]
        %v223 = vld [vmem:[#allocation5 + $0x18] sm:$0xff]
        %v224 = vld [vmem:[#allocation5 + $0x20] sm:$0xff]
        %v225 = vld [vmem:[#allocation5 + $0x28] sm:$0xff]
        %v226 = vld [vmem:[#allocation5 + $0x30] sm:$0xff]
        %v227 = vld [vmem:[#allocation5 + $0x38] sm:$0xff]
        %v228 = vld [vmem:[#allocation5 + $0x40] sm:$0xff]
        %v229 = vld [vmem:[#allocation5 + $0x48] sm:$0xff]
        %v230 = vld [vmem:[#allocation5 + $0x50] sm:$0xff]
        %v231 = vld [vmem:[#allocation5 + $0x58] sm:$0xff]
        %v232 = vld [vmem:[#allocation5 + $0x60] sm:$0xff]
        %v233 = vld [vmem:[#allocation5 + $0x68] sm:$0xff]
        %v234 = vld [vmem:[#allocation5 + $0x70] sm:$0xff]
        %v235 = vld [vmem:[#allocation5 + $0x78] sm:$0xff]
        %v236 = vld [vmem:[#allocation5 + $0x80] sm:$0xff]
        %v237 = vld [vmem:[#allocation5 + $0x88] sm:$0xff]
        %v238 = vld [vmem:[#allocation5 + $0x90] sm:$0xff]
        %v239 = vld [vmem:[#allocation5 + $0x98] sm:$0xff]
        %v240 = vld [vmem:[#allocation5 + $0xa0] sm:$0xff]
        %v241 = vld [vmem:[#allocation5 + $0xa8] sm:$0xff]
        %v242 = vld [vmem:[#allocation5 + $0xb0] sm:$0xff]
        %v243 = vld [vmem:[#allocation5 + $0xb8] sm:$0xff]
        %v244 = vld [vmem:[#allocation5 + $0xc0] sm:$0xff]
        %v245 = vld [vmem:[#allocation5 + $0xc8] sm:$0xff]
        %v246 = vld [vmem:[#allocation5 + $0xd0] sm:$0xff]
        %v247 = vld [vmem:[#allocation5 + $0xd8] sm:$0xff]
        %v248 = vld [vmem:[#allocation5 + $0xe0] sm:$0xff]
        %v249 = vld [vmem:[#allocation5 + $0xe8] sm:$0xff]
        %v250 = vld [vmem:[#allocation5 + $0xf0] sm:$0xff]
        %v251 = vld [vmem:[#allocation5 + $0xf8] sm:$0xff]
        %v252 = vld [vmem:[#allocation5 + $0x100] sm:$0xff]
        %v253 = vld [vmem:[#allocation5 + $0x108] sm:$0xff]
        %v254 = vld [vmem:[#allocation5 + $0x110] sm:$0xff]
        %v255 = vld [vmem:[#allocation5 + $0x118] sm:$0xff]
        %v256 = vld [vmem:[#allocation5 + $0x120] sm:$0xff]
        %v257 = vld [vmem:[#allocation5 + $0x128] sm:$0xff]
        %v258 = vld [vmem:[#allocation5 + $0x130] sm:$0xff]
        %v259 = vld [vmem:[#allocation5 + $0x138] sm:$0xff]
        %v260 = vld [vmem:[#allocation5 + $0x140] sm:$0xff]
        %v261 = vld [vmem:[#allocation5 + $0x148] sm:$0xff]
        %v262 = vld [vmem:[#allocation5 + $0x150] sm:$0xff]
        %v263 = vld [vmem:[#allocation5 + $0x158] sm:$0xff]
        %v264 = vld [vmem:[#allocation5 + $0x160] sm:$0xff]
        %v265 = vld [vmem:[#allocation5 + $0x168] sm:$0xff]
        %v266 = vld [vmem:[#allocation5 + $0x170] sm:$0xff]
        %v267 = vld [vmem:[#allocation5 + $0x178] sm:$0xff]
        %v268 = vld [vmem:[#allocation5 + $0x180] sm:$0xff]
        %v269 = vld [vmem:[#allocation5 + $0x188] sm:$0xff]
        %v270 = vld [vmem:[#allocation5 + $0x190] sm:$0xff]
        %v271 = vld [vmem:[#allocation5 + $0x198] sm:$0xff]
        %v272 = vld [vmem:[#allocation5 + $0x1a0] sm:$0xff]
        %v273 = vld [vmem:[#allocation5 + $0x1a8] sm:$0xff]
        %v274 = vld [vmem:[#allocation5 + $0x1b0] sm:$0xff]
        %v275 = vld [vmem:[#allocation5 + $0x1b8] sm:$0xff]
        %v276 = vld [vmem:[#allocation5 + $0x1c0] sm:$0xff]
        %v277 = vld [vmem:[#allocation5 + $0x1c8] sm:$0xff]
        %v278 = vld [vmem:[#allocation5 + $0x1d0] sm:$0xff]
        %v279 = vld [vmem:[#allocation5 + $0x1d8] sm:$0xff]
        %v280 = vld [vmem:[#allocation5 + $0x1e0] sm:$0xff]
        %v281 = vld [vmem:[#allocation5 + $0x1e8] sm:$0xff]
        %v282 = vld [vmem:[#allocation5 + $0x1f0] sm:$0xff]
        %v283 = vld [vmem:[#allocation5 + $0x1f8] sm:$0xff]
        %v348 = vunpack.c.l.b16 %v220
        %v349 = vunpack.c.h.b16 %v220
        %v350 = vunpack.c.l.b16 %v221
        %v351 = vunpack.c.h.b16 %v221
        %v352 = vunpack.c.l.b16 %v222
        %v353 = vunpack.c.h.b16 %v222
        %v354 = vunpack.c.l.b16 %v223
        %v355 = vunpack.c.h.b16 %v223
        %v356 = vunpack.c.l.b16 %v224
        %v357 = vunpack.c.h.b16 %v224
        %v358 = vunpack.c.l.b16 %v225
        %v359 = vunpack.c.h.b16 %v225
        %v360 = vunpack.c.l.b16 %v226
        %v361 = vunpack.c.h.b16 %v226
        %v362 = vunpack.c.l.b16 %v227
        %v363 = vunpack.c.h.b16 %v227
        %v364 = vunpack.c.l.b16 %v228
        %v365 = vunpack.c.h.b16 %v228
        %v366 = vunpack.c.l.b16 %v229
        %v367 = vunpack.c.h.b16 %v229
        %v368 = vunpack.c.l.b16 %v230
        %v369 = vunpack.c.h.b16 %v230
        %v370 = vunpack.c.l.b16 %v231
        %v371 = vunpack.c.h.b16 %v231
        %v372 = vunpack.c.l.b16 %v232
        %v373 = vunpack.c.h.b16 %v232
        %v374 = vunpack.c.l.b16 %v233
        %v375 = vunpack.c.h.b16 %v233
        %v376 = vunpack.c.l.b16 %v234
        %v377 = vunpack.c.h.b16 %v234
        %v378 = vunpack.c.l.b16 %v235
        %v379 = vunpack.c.h.b16 %v235
        %v380 = vunpack.c.l.b16 %v236
        %v381 = vunpack.c.h.b16 %v236
        %v382 = vunpack.c.l.b16 %v237
        %v383 = vunpack.c.h.b16 %v237
        %v384 = vunpack.c.l.b16 %v238
        %v385 = vunpack.c.h.b16 %v238
        %v386 = vunpack.c.l.b16 %v239
        %v387 = vunpack.c.h.b16 %v239
        %v388 = vunpack.c.l.b16 %v240
        %v389 = vunpack.c.h.b16 %v240
        %v390 = vunpack.c.l.b16 %v241
        %v391 = vunpack.c.h.b16 %v241
        %v392 = vunpack.c.l.b16 %v242
        %v393 = vunpack.c.h.b16 %v242
        %v394 = vunpack.c.l.b16 %v243
        %v395 = vunpack.c.h.b16 %v243
        %v396 = vunpack.c.l.b16 %v244
        %v397 = vunpack.c.h.b16 %v244
        %v398 = vunpack.c.l.b16 %v245
        %v399 = vunpack.c.h.b16 %v245
        %v400 = vunpack.c.l.b16 %v246
        %v401 = vunpack.c.h.b16 %v246
        %v402 = vunpack.c.l.b16 %v247
        %v403 = vunpack.c.h.b16 %v247
        %v404 = vunpack.c.l.b16 %v248
        %v405 = vunpack.c.h.b16 %v248
        %v406 = vunpack.c.l.b16 %v249
        %v407 = vunpack.c.h.b16 %v249
        %v408 = vunpack.c.l.b16 %v250
        %v409 = vunpack.c.h.b16 %v250
        %v410 = vunpack.c.l.b16 %v251
        %v411 = vunpack.c.h.b16 %v251
        %v412 = vunpack.c.l.b16 %v252
        %v413 = vunpack.c.h.b16 %v252
        %v414 = vunpack.c.l.b16 %v253
        %v415 = vunpack.c.h.b16 %v253
        %v416 = vunpack.c.l.b16 %v254
        %v417 = vunpack.c.h.b16 %v254
        %v418 = vunpack.c.l.b16 %v255
        %v419 = vunpack.c.h.b16 %v255
        %v420 = vunpack.c.l.b16 %v256
        %v421 = vunpack.c.h.b16 %v256
        %v422 = vunpack.c.l.b16 %v257
        %v423 = vunpack.c.h.b16 %v257
        %v424 = vunpack.c.l.b16 %v258
        %v425 = vunpack.c.h.b16 %v258
        %v426 = vunpack.c.l.b16 %v259
        %v427 = vunpack.c.h.b16 %v259
        %v428 = vunpack.c.l.b16 %v260
        %v429 = vunpack.c.h.b16 %v260
        %v430 = vunpack.c.l.b16 %v261
        %v431 = vunpack.c.h.b16 %v261
        %v432 = vunpack.c.l.b16 %v262
        %v433 = vunpack.c.h.b16 %v262
        %v434 = vunpack.c.l.b16 %v263
        %v435 = vunpack.c.h.b16 %v263
        %v436 = vunpack.c.l.b16 %v264
        %v437 = vunpack.c.h.b16 %v264
        %v438 = vunpack.c.l.b16 %v265
        %v439 = vunpack.c.h.b16 %v265
        %v440 = vunpack.c.l.b16 %v266
        %v441 = vunpack.c.h.b16 %v266
        %v442 = vunpack.c.l.b16 %v267
        %v443 = vunpack.c.h.b16 %v267
        %v444 = vunpack.c.l.b16 %v268
        %v445 = vunpack.c.h.b16 %v268
        %v446 = vunpack.c.l.b16 %v269
        %v447 = vunpack.c.h.b16 %v269
        %v448 = vunpack.c.l.b16 %v270
        %v449 = vunpack.c.h.b16 %v270
        %v450 = vunpack.c.l.b16 %v271
        %v451 = vunpack.c.h.b16 %v271
        %v452 = vunpack.c.l.b16 %v272
        %v453 = vunpack.c.h.b16 %v272
        %v454 = vunpack.c.l.b16 %v273
        %v455 = vunpack.c.h.b16 %v273
        %v456 = vunpack.c.l.b16 %v274
        %v457 = vunpack.c.h.b16 %v274
        %v458 = vunpack.c.l.b16 %v275
        %v459 = vunpack.c.h.b16 %v275
        %v460 = vunpack.c.l.b16 %v276
        %v461 = vunpack.c.h.b16 %v276
        %v462 = vunpack.c.l.b16 %v277
        %v463 = vunpack.c.h.b16 %v277
        %v464 = vunpack.c.l.b16 %v278
        %v465 = vunpack.c.h.b16 %v278
        %v466 = vunpack.c.l.b16 %v279
        %v467 = vunpack.c.h.b16 %v279
        %v468 = vunpack.c.l.b16 %v280
        %v469 = vunpack.c.h.b16 %v280
        %v470 = vunpack.c.l.b16 %v281
        %v471 = vunpack.c.h.b16 %v281
        %v472 = vunpack.c.l.b16 %v282
        %v473 = vunpack.c.h.b16 %v282
        %v474 = vunpack.c.l.b16 %v283
        %v475 = vunpack.c.h.b16 %v283
        %v476 = vpack.c.b16 %v350, %v348
        %v477 = vpack.c.b16 %v351, %v349
        %v478 = vpack.c.b16 %v354, %v352
        %v479 = vpack.c.b16 %v355, %v353
        %v480 = vpack.c.b16 %v358, %v356
        %v481 = vpack.c.b16 %v359, %v357
        %v482 = vpack.c.b16 %v362, %v360
        %v483 = vpack.c.b16 %v363, %v361
        %v484 = vpack.c.b16 %v366, %v364
        %v485 = vpack.c.b16 %v367, %v365
        %v486 = vpack.c.b16 %v370, %v368
        %v487 = vpack.c.b16 %v371, %v369
        %v488 = vpack.c.b16 %v374, %v372
        %v489 = vpack.c.b16 %v375, %v373
        %v490 = vpack.c.b16 %v378, %v376
        %v491 = vpack.c.b16 %v379, %v377
        %v492 = vpack.c.b16 %v382, %v380
        %v493 = vpack.c.b16 %v383, %v381
        %v494 = vpack.c.b16 %v386, %v384
        %v495 = vpack.c.b16 %v387, %v385
        %v496 = vpack.c.b16 %v390, %v388
        %v497 = vpack.c.b16 %v391, %v389
        %v498 = vpack.c.b16 %v394, %v392
        %v499 = vpack.c.b16 %v395, %v393
        %v500 = vpack.c.b16 %v398, %v396
        %v501 = vpack.c.b16 %v399, %v397
        %v502 = vpack.c.b16 %v402, %v400
        %v503 = vpack.c.b16 %v403, %v401
        %v504 = vpack.c.b16 %v406, %v404
        %v505 = vpack.c.b16 %v407, %v405
        %v506 = vpack.c.b16 %v410, %v408
        %v507 = vpack.c.b16 %v411, %v409
        %v508 = vpack.c.b16 %v414, %v412
        %v509 = vpack.c.b16 %v415, %v413
        %v510 = vpack.c.b16 %v418, %v416
        %v511 = vpack.c.b16 %v419, %v417
        %v512 = vpack.c.b16 %v422, %v420
        %v513 = vpack.c.b16 %v423, %v421
        %v514 = vpack.c.b16 %v426, %v424
        %v515 = vpack.c.b16 %v427, %v425
        %v516 = vpack.c.b16 %v430, %v428
        %v517 = vpack.c.b16 %v431, %v429
        %v518 = vpack.c.b16 %v434, %v432
        %v519 = vpack.c.b16 %v435, %v433
        %v520 = vpack.c.b16 %v438, %v436
        %v521 = vpack.c.b16 %v439, %v437
        %v522 = vpack.c.b16 %v442, %v440
        %v523 = vpack.c.b16 %v443, %v441
        %v524 = vpack.c.b16 %v446, %v444
        %v525 = vpack.c.b16 %v447, %v445
        %v526 = vpack.c.b16 %v450, %v448
        %v527 = vpack.c.b16 %v451, %v449
        %v528 = vpack.c.b16 %v454, %v452
        %v529 = vpack.c.b16 %v455, %v453
        %v530 = vpack.c.b16 %v458, %v456
        %v531 = vpack.c.b16 %v459, %v457
        %v532 = vpack.c.b16 %v462, %v460
        %v533 = vpack.c.b16 %v463, %v461
        %v534 = vpack.c.b16 %v466, %v464
        %v535 = vpack.c.b16 %v467, %v465
        %v536 = vpack.c.b16 %v470, %v468
        %v537 = vpack.c.b16 %v471, %v469
        %v538 = vpack.c.b16 %v474, %v472
        %v539 = vpack.c.b16 %v475, %v473
        %604 = vmatprep.subr.bf16.mxu0 %v491
        %605 = vmatpush1.bf16.xpose.msra.mxu0 %v490
        %606 = vmatprep.subr.bf16.mxu0 %v489
        %607 = vmatpush1.bf16.xpose.msra.mxu0 %v488
        %608 = vmatprep.subr.bf16.mxu0 %v487
        %609 = vmatpush1.bf16.xpose.msra.mxu0 %v486
        %610 = vmatprep.subr.bf16.mxu0 %v485
        %611 = vmatpush1.bf16.xpose.msra.mxu0 %v484
        %612 = vmatprep.subr.bf16.mxu0 %v483
        %613 = vmatpush1.bf16.xpose.msra.mxu0 %v482
        %614 = vmatprep.subr.bf16.mxu0 %v481
        %615 = vmatpush1.bf16.xpose.msra.mxu0 %v480
        %616 = vmatprep.subr.bf16.mxu0 %v479
        %617 = vmatpush1.bf16.xpose.msra.mxu0 %v478
        %618 = vmatprep.subr.bf16.mxu0 %v477
        %619 = vmatpush1.bf16.xpose.msra.mxu0 %v476
        %620 = vmatprep.subr.bf16.mxu0 %v507
        %621 = vmatpush2.bf16.xpose.msra.mxu0 %v506
        %622 = vmatprep.subr.bf16.mxu0 %v505
        %623 = vmatpush2.bf16.xpose.msra.mxu0 %v504
        %624 = vmatprep.subr.bf16.mxu0 %v503
        %625 = vmatpush2.bf16.xpose.msra.mxu0 %v502
        %626 = vmatprep.subr.bf16.mxu0 %v501
        %627 = vmatpush2.bf16.xpose.msra.mxu0 %v500
        %628 = vmatprep.subr.bf16.mxu0 %v499
        %629 = vmatpush2.bf16.xpose.msra.mxu0 %v498
        %630 = vmatprep.subr.bf16.mxu0 %v497
        %631 = vmatpush2.bf16.xpose.msra.mxu0 %v496
        %632 = vmatprep.subr.bf16.mxu0 %v495
        %633 = vmatpush2.bf16.xpose.msra.mxu0 %v494
        %634 = vmatprep.subr.bf16.mxu0 %v493
        %635 = vmatpush2.bf16.xpose.msra.mxu0 %v492
        %636 = vmatprep.mubr.bf16.mxu0 %v213
        %637 = vmatmul.mubr.bf16.gmra.mxu0 %v212
        %v638 = vpop.f32.mrf.mxu0
        %v639 = vadd.f32 0.0, %v638
        %v640 = vpop.f32.mrf.mxu0
        %v641 = vadd.f32 0.0, %v640
        %v642 = vpop.f32.mrf.mxu0
        %v643 = vadd.f32 0.0, %v642
        %v644 = vpop.f32.mrf.mxu0
        %v645 = vadd.f32 0.0, %v644
        %646 = vmatprep.mubr.bf16.mxu0 %v215
        %647 = vmatmul.mubr.bf16.gmra.mxu0 %v214
        %v648 = vpop.f32.mrf.mxu0
        %v649 = vadd.f32 0.0, %v648
        %v650 = vpop.f32.mrf.mxu0
        %v651 = vadd.f32 0.0, %v650
        %v652 = vpop.f32.mrf.mxu0
        %v653 = vadd.f32 0.0, %v652
        %v654 = vpop.f32.mrf.mxu0
        %v655 = vadd.f32 0.0, %v654
        %656 = vmatprep.mubr.bf16.mxu0 %v217
        %657 = vmatmul.mubr.bf16.gmra.mxu0 %v216
        %v658 = vpop.f32.mrf.mxu0
        %v659 = vadd.f32 0.0, %v658
        %v660 = vpop.f32.mrf.mxu0
        %v661 = vadd.f32 0.0, %v660
        %v662 = vpop.f32.mrf.mxu0
        %v663 = vadd.f32 0.0, %v662
        %v664 = vpop.f32.mrf.mxu0
        %v665 = vadd.f32 0.0, %v664
        %666 = vmatprep.mubr.bf16.mxu0 %v219
        %667 = vmatmul.mubr.bf16.gmra.mxu0 %v218
        %v668 = vpop.f32.mrf.mxu0
        %v669 = vadd.f32 0.0, %v668
        %v670 = vpop.f32.mrf.mxu0
        %v671 = vadd.f32 0.0, %v670
        %v672 = vpop.f32.mrf.mxu0
        %v673 = vadd.f32 0.0, %v672
        %v674 = vpop.f32.mrf.mxu0
        %v675 = vadd.f32 0.0, %v674
        %676 = vdwg.mxu0
        %677 = vmatprep.subr.bf16.mxu0 %v523
        %678 = vmatpush1.bf16.xpose.msra.mxu0 %v522
        %679 = vmatprep.subr.bf16.mxu0 %v521
        %680 = vmatpush1.bf16.xpose.msra.mxu0 %v520
        %681 = vmatprep.subr.bf16.mxu0 %v519
        %682 = vmatpush1.bf16.xpose.msra.mxu0 %v518
        %683 = vmatprep.subr.bf16.mxu0 %v517
        %684 = vmatpush1.bf16.xpose.msra.mxu0 %v516
        %685 = vmatprep.subr.bf16.mxu0 %v515
        %686 = vmatpush1.bf16.xpose.msra.mxu0 %v514
        %687 = vmatprep.subr.bf16.mxu0 %v513
        %688 = vmatpush1.bf16.xpose.msra.mxu0 %v512
        %689 = vmatprep.subr.bf16.mxu0 %v511
        %690 = vmatpush1.bf16.xpose.msra.mxu0 %v510
        %691 = vmatprep.subr.bf16.mxu0 %v509
        %692 = vmatpush1.bf16.xpose.msra.mxu0 %v508
        %693 = vmatprep.subr.bf16.mxu0 %v539
        %694 = vmatpush2.bf16.xpose.msra.mxu0 %v538
        %695 = vmatprep.subr.bf16.mxu0 %v537
        %696 = vmatpush2.bf16.xpose.msra.mxu0 %v536
        %697 = vmatprep.subr.bf16.mxu0 %v535
        %698 = vmatpush2.bf16.xpose.msra.mxu0 %v534
        %699 = vmatprep.subr.bf16.mxu0 %v533
        %700 = vmatpush2.bf16.xpose.msra.mxu0 %v532
        %701 = vmatprep.subr.bf16.mxu0 %v531
        %702 = vmatpush2.bf16.xpose.msra.mxu0 %v530
        %703 = vmatprep.subr.bf16.mxu0 %v529
        %704 = vmatpush2.bf16.xpose.msra.mxu0 %v528
        %705 = vmatprep.subr.bf16.mxu0 %v527
        %706 = vmatpush2.bf16.xpose.msra.mxu0 %v526
        %707 = vmatprep.subr.bf16.mxu0 %v525
        %708 = vmatpush2.bf16.xpose.msra.mxu0 %v524
        %709 = vmatprep.mubr.bf16.mxu0 %v213
        %710 = vmatmul.mubr.bf16.gmra.mxu0 %v212
        %v711 = vpop.f32.mrf.mxu0
        %v712 = vadd.f32 0.0, %v711
        %v713 = vpop.f32.mrf.mxu0
        %v714 = vadd.f32 0.0, %v713
        %v715 = vpop.f32.mrf.mxu0
        %v716 = vadd.f32 0.0, %v715
        %v717 = vpop.f32.mrf.mxu0
        %v718 = vadd.f32 0.0, %v717
        %719 = vmatprep.mubr.bf16.mxu0 %v215
        %720 = vmatmul.mubr.bf16.gmra.mxu0 %v214
        %v721 = vpop.f32.mrf.mxu0
        %v722 = vadd.f32 0.0, %v721
        %v723 = vpop.f32.mrf.mxu0
        %v724 = vadd.f32 0.0, %v723
        %v725 = vpop.f32.mrf.mxu0
        %v726 = vadd.f32 0.0, %v725
        %v727 = vpop.f32.mrf.mxu0
        %v728 = vadd.f32 0.0, %v727
        %729 = vmatprep.mubr.bf16.mxu0 %v217
        %730 = vmatmul.mubr.bf16.gmra.mxu0 %v216
        %v731 = vpop.f32.mrf.mxu0
        %v732 = vadd.f32 0.0, %v731
        %v733 = vpop.f32.mrf.mxu0
        %v734 = vadd.f32 0.0, %v733
        %v735 = vpop.f32.mrf.mxu0
        %v736 = vadd.f32 0.0, %v735
        %v737 = vpop.f32.mrf.mxu0
        %v738 = vadd.f32 0.0, %v737
        %739 = vmatprep.mubr.bf16.mxu0 %v219
        %740 = vmatmul.mubr.bf16.gmra.mxu0 %v218
        %v741 = vpop.f32.mrf.mxu0
        %v742 = vadd.f32 0.0, %v741
        %v743 = vpop.f32.mrf.mxu0
        %v744 = vadd.f32 0.0, %v743
        %v745 = vpop.f32.mrf.mxu0
        %v746 = vadd.f32 0.0, %v745
        %v747 = vpop.f32.mrf.mxu0
        %v748 = vadd.f32 0.0, %v747
        %749 = vdwg.mxu0
        %v750 = vmax.f32 %v639, %v641
        %v751 = vmax.f32 %v750, %v712
        %v752 = vmax.f32 %v751, %v714
        %753 = vmax.xlane.f32.xlu0 %v752
        %v754 = vpop.xlane.xlu0 %753
        %v755 = vmax.f32 %v643, %v645
        %v756 = vmax.f32 %v755, %v716
        %v757 = vmax.f32 %v756, %v718
        %758 = vmax.xlane.f32.xlu0 %v757
        %v759 = vpop.xlane.xlu0 %758
        %v760 = vmax.f32 %v649, %v651
        %v761 = vmax.f32 %v760, %v722
        %v762 = vmax.f32 %v761, %v724
        %763 = vmax.xlane.f32.xlu0 %v762
        %v764 = vpop.xlane.xlu0 %763
        %v765 = vmax.f32 %v653, %v655
        %v766 = vmax.f32 %v765, %v726
        %v767 = vmax.f32 %v766, %v728
        %768 = vmax.xlane.f32.xlu0 %v767
        %v769 = vpop.xlane.xlu0 %768
        %v770 = vmax.f32 %v659, %v661
        %v771 = vmax.f32 %v770, %v732
        %v772 = vmax.f32 %v771, %v734
        %773 = vmax.xlane.f32.xlu0 %v772
        %v774 = vpop.xlane.xlu0 %773
        %v775 = vmax.f32 %v663, %v665
        %v776 = vmax.f32 %v775, %v736
        %v777 = vmax.f32 %v776, %v738
        %778 = vmax.xlane.f32.xlu0 %v777
        %v779 = vpop.xlane.xlu0 %778
        %v780 = vmax.f32 %v669, %v671
        %v781 = vmax.f32 %v780, %v742
        %v782 = vmax.f32 %v781, %v744
        %783 = vmax.xlane.f32.xlu0 %v782
        %v784 = vpop.xlane.xlu0 %783
        %v785 = vmax.f32 %v673, %v675
        %v786 = vmax.f32 %v785, %v746
        %v787 = vmax.f32 %v786, %v748
        %788 = vmax.xlane.f32.xlu0 %v787
        %v789 = vpop.xlane.xlu0 %788
        %v790 = vsub.f32 %v639, %v754
        %v791 = vsub.f32 %v641, %v754
        %v792 = vsub.f32 %v712, %v754
        %v793 = vsub.f32 %v714, %v754
        %v794 = vsub.f32 %v643, %v759
        %v795 = vsub.f32 %v645, %v759
        %v796 = vsub.f32 %v716, %v759
        %v797 = vsub.f32 %v718, %v759
        %v798 = vsub.f32 %v649, %v764
        %v799 = vsub.f32 %v651, %v764
        %v800 = vsub.f32 %v722, %v764
        %v801 = vsub.f32 %v724, %v764
        %v802 = vsub.f32 %v653, %v769
        %v803 = vsub.f32 %v655, %v769
        %v804 = vsub.f32 %v726, %v769
        %v805 = vsub.f32 %v728, %v769
        %v806 = vsub.f32 %v659, %v774
        %v807 = vsub.f32 %v661, %v774
        %v808 = vsub.f32 %v732, %v774
        %v809 = vsub.f32 %v734, %v774
        %v810 = vsub.f32 %v663, %v779
        %v811 = vsub.f32 %v665, %v779
        %v812 = vsub.f32 %v736, %v779
        %v813 = vsub.f32 %v738, %v779
        %v814 = vsub.f32 %v669, %v784
        %v815 = vsub.f32 %v671, %v784
        %v816 = vsub.f32 %v742, %v784
        %v817 = vsub.f32 %v744, %v784
        %v818 = vsub.f32 %v673, %v789
        %v819 = vsub.f32 %v675, %v789
        %v820 = vsub.f32 %v746, %v789
        %v821 = vsub.f32 %v748, %v789
        %v822 = vmul.f32 %v790, 1.442695
        %v823 = vpow.pop %v822
        %v824 = vmul.f32 %v791, 1.442695
        %v825 = vpow.pop %v824
        %v826 = vmul.f32 %v792, 1.442695
        %v827 = vpow.pop %v826
        %v828 = vmul.f32 %v793, 1.442695
        %v829 = vpow.pop %v828
        %v830 = vmul.f32 %v794, 1.442695
        %v831 = vpow.pop %v830
        %v832 = vmul.f32 %v795, 1.442695
        %v833 = vpow.pop %v832
        %v834 = vmul.f32 %v796, 1.442695
        %v835 = vpow.pop %v834
        %v836 = vmul.f32 %v797, 1.442695
        %v837 = vpow.pop %v836
        %v838 = vmul.f32 %v798, 1.442695
        %v839 = vpow.pop %v838
        %v840 = vmul.f32 %v799, 1.442695
        %v841 = vpow.pop %v840
        %v842 = vmul.f32 %v800, 1.442695
        %v843 = vpow.pop %v842
        %v844 = vmul.f32 %v801, 1.442695
        %v845 = vpow.pop %v844
        %v846 = vmul.f32 %v802, 1.442695
        %v847 = vpow.pop %v846
        %v848 = vmul.f32 %v803, 1.442695
        %v849 = vpow.pop %v848
        %v850 = vmul.f32 %v804, 1.442695
        %v851 = vpow.pop %v850
        %v852 = vmul.f32 %v805, 1.442695
        %v853 = vpow.pop %v852
        %v854 = vmul.f32 %v806, 1.442695
        %v855 = vpow.pop %v854
        %v856 = vmul.f32 %v807, 1.442695
        %v857 = vpow.pop %v856
        %v858 = vmul.f32 %v808, 1.442695
        %v859 = vpow.pop %v858
        %v860 = vmul.f32 %v809, 1.442695
        %v861 = vpow.pop %v860
        %v862 = vmul.f32 %v810, 1.442695
        %v863 = vpow.pop %v862
        %v864 = vmul.f32 %v811, 1.442695
        %v865 = vpow.pop %v864
        %v866 = vmul.f32 %v812, 1.442695
        %v867 = vpow.pop %v866
        %v868 = vmul.f32 %v813, 1.442695
        %v869 = vpow.pop %v868
        %v870 = vmul.f32 %v814, 1.442695
        %v871 = vpow.pop %v870
        %v872 = vmul.f32 %v815, 1.442695
        %v873 = vpow.pop %v872
        %v874 = vmul.f32 %v816, 1.442695
        %v875 = vpow.pop %v874
        %v876 = vmul.f32 %v817, 1.442695
        %v877 = vpow.pop %v876
        %v878 = vmul.f32 %v818, 1.442695
        %v879 = vpow.pop %v878
        %v880 = vmul.f32 %v819, 1.442695
        %v881 = vpow.pop %v880
        %v882 = vmul.f32 %v820, 1.442695
        %v883 = vpow.pop %v882
        %v884 = vmul.f32 %v821, 1.442695
        %v885 = vpow.pop %v884
        %v886 = vadd.f32 %v823, %v825
        %v887 = vadd.f32 %v886, %v827
        %v888 = vadd.f32 %v887, %v829
        %889 = vadd.xlane.f32.xlu0 %v888
        %v890 = vpop.xlane.xlu0 %889
        %v891 = vadd.f32 %v831, %v833
        %v892 = vadd.f32 %v891, %v835
        %v893 = vadd.f32 %v892, %v837
        %894 = vadd.xlane.f32.xlu0 %v893
        %v895 = vpop.xlane.xlu0 %894
        %v896 = vadd.f32 %v839, %v841
        %v897 = vadd.f32 %v896, %v843
        %v898 = vadd.f32 %v897, %v845
        %899 = vadd.xlane.f32.xlu0 %v898
        %v900 = vpop.xlane.xlu0 %899
        %v901 = vadd.f32 %v847, %v849
        %v902 = vadd.f32 %v901, %v851
        %v903 = vadd.f32 %v902, %v853
        %904 = vadd.xlane.f32.xlu0 %v903
        %v905 = vpop.xlane.xlu0 %904
        %v906 = vadd.f32 %v855, %v857
        %v907 = vadd.f32 %v906, %v859
        %v908 = vadd.f32 %v907, %v861
        %909 = vadd.xlane.f32.xlu0 %v908
        %v910 = vpop.xlane.xlu0 %909
        %v911 = vadd.f32 %v863, %v865
        %v912 = vadd.f32 %v911, %v867
        %v913 = vadd.f32 %v912, %v869
        %914 = vadd.xlane.f32.xlu0 %v913
        %v915 = vpop.xlane.xlu0 %914
        %v916 = vadd.f32 %v871, %v873
        %v917 = vadd.f32 %v916, %v875
        %v918 = vadd.f32 %v917, %v877
        %919 = vadd.xlane.f32.xlu0 %v918
        %v920 = vpop.xlane.xlu0 %919
        %v921 = vadd.f32 %v879, %v881
        %v922 = vadd.f32 %v921, %v883
        %v923 = vadd.f32 %v922, %v885
        %924 = vadd.xlane.f32.xlu0 %v923
        %v925 = vpop.xlane.xlu0 %924
        %v926 = vpack.c.bf16 %v831, %v823
        %v927 = vpack.c.bf16 %v833, %v825
        %v928 = vpack.c.bf16 %v835, %v827
        %v929 = vpack.c.bf16 %v837, %v829
        %v930 = vpack.c.bf16 %v847, %v839
        %v931 = vpack.c.bf16 %v849, %v841
        %v932 = vpack.c.bf16 %v851, %v843
        %v933 = vpack.c.bf16 %v853, %v845
        %v934 = vpack.c.bf16 %v863, %v855
        %v935 = vpack.c.bf16 %v865, %v857
        %v936 = vpack.c.bf16 %v867, %v859
        %v937 = vpack.c.bf16 %v869, %v861
        %v938 = vpack.c.bf16 %v879, %v871
        %v939 = vpack.c.bf16 %v881, %v873
        %v940 = vpack.c.bf16 %v883, %v875
        %v941 = vpack.c.bf16 %v885, %v877
        %942 = vmatprep.subr.bf16.mxu0 %v491
        %943 = vmatpush1.bf16.msra.mxu0 %v490
        %944 = vmatprep.subr.bf16.mxu0 %v489
        %945 = vmatpush1.bf16.msra.mxu0 %v488
        %946 = vmatprep.subr.bf16.mxu0 %v487
        %947 = vmatpush1.bf16.msra.mxu0 %v486
        %948 = vmatprep.subr.bf16.mxu0 %v485
        %949 = vmatpush1.bf16.msra.mxu0 %v484
        %950 = vmatprep.subr.bf16.mxu0 %v483
        %951 = vmatpush1.bf16.msra.mxu0 %v482
        %952 = vmatprep.subr.bf16.mxu0 %v481
        %953 = vmatpush1.bf16.msra.mxu0 %v480
        %954 = vmatprep.subr.bf16.mxu0 %v479
        %955 = vmatpush1.bf16.msra.mxu0 %v478
        %956 = vmatprep.subr.bf16.mxu0 %v477
        %957 = vmatpush1.bf16.msra.mxu0 %v476
        %958 = vmatprep.subr.bf16.mxu0 %v507
        %959 = vmatpush2.bf16.msra.mxu0 %v506
        %960 = vmatprep.subr.bf16.mxu0 %v505
        %961 = vmatpush2.bf16.msra.mxu0 %v504
        %962 = vmatprep.subr.bf16.mxu0 %v503
        %963 = vmatpush2.bf16.msra.mxu0 %v502
        %964 = vmatprep.subr.bf16.mxu0 %v501
        %965 = vmatpush2.bf16.msra.mxu0 %v500
        %966 = vmatprep.subr.bf16.mxu0 %v499
        %967 = vmatpush2.bf16.msra.mxu0 %v498
        %968 = vmatprep.subr.bf16.mxu0 %v497
        %969 = vmatpush2.bf16.msra.mxu0 %v496
        %970 = vmatprep.subr.bf16.mxu0 %v495
        %971 = vmatpush2.bf16.msra.mxu0 %v494
        %972 = vmatprep.subr.bf16.mxu0 %v493
        %973 = vmatpush2.bf16.msra.mxu0 %v492
        %974 = vmatprep.mubr.bf16.mxu0 %v927
        %975 = vmatmul.mubr.bf16.gmra.mxu0 %v926
        %v976 = vpop.f32.mrf.mxu0
        %v977 = vadd.f32 0.0, %v976
        %v978 = vpop.f32.mrf.mxu0
        %v979 = vadd.f32 0.0, %v978
        %v980 = vpop.f32.mrf.mxu0
        %v981 = vadd.f32 0.0, %v980
        %v982 = vpop.f32.mrf.mxu0
        %v983 = vadd.f32 0.0, %v982
        %984 = vmatprep.mubr.bf16.mxu0 %v931
        %985 = vmatmul.mubr.bf16.gmra.mxu0 %v930
        %v986 = vpop.f32.mrf.mxu0
        %v987 = vadd.f32 0.0, %v986
        %v988 = vpop.f32.mrf.mxu0
        %v989 = vadd.f32 0.0, %v988
        %v990 = vpop.f32.mrf.mxu0
        %v991 = vadd.f32 0.0, %v990
        %v992 = vpop.f32.mrf.mxu0
        %v993 = vadd.f32 0.0, %v992
        %994 = vmatprep.mubr.bf16.mxu0 %v935
        %995 = vmatmul.mubr.bf16.gmra.mxu0 %v934
        %v996 = vpop.f32.mrf.mxu0
        %v997 = vadd.f32 0.0, %v996
        %v998 = vpop.f32.mrf.mxu0
        %v999 = vadd.f32 0.0, %v998
        %v1000 = vpop.f32.mrf.mxu0
        %v1001 = vadd.f32 0.0, %v1000
        %v1002 = vpop.f32.mrf.mxu0
        %v1003 = vadd.f32 0.0, %v1002
        %1004 = vmatprep.mubr.bf16.mxu0 %v939
        %1005 = vmatmul.mubr.bf16.gmra.mxu0 %v938
        %v1006 = vpop.f32.mrf.mxu0
        %v1007 = vadd.f32 0.0, %v1006
        %v1008 = vpop.f32.mrf.mxu0
        %v1009 = vadd.f32 0.0, %v1008
        %v1010 = vpop.f32.mrf.mxu0
        %v1011 = vadd.f32 0.0, %v1010
        %v1012 = vpop.f32.mrf.mxu0
        %v1013 = vadd.f32 0.0, %v1012
        %1014 = vdwg.mxu0
        %1015 = vmatprep.subr.bf16.mxu0 %v523
        %1016 = vmatpush1.bf16.msra.mxu0 %v522
        %1017 = vmatprep.subr.bf16.mxu0 %v521
        %1018 = vmatpush1.bf16.msra.mxu0 %v520
        %1019 = vmatprep.subr.bf16.mxu0 %v519
        %1020 = vmatpush1.bf16.msra.mxu0 %v518
        %1021 = vmatprep.subr.bf16.mxu0 %v517
        %1022 = vmatpush1.bf16.msra.mxu0 %v516
        %1023 = vmatprep.subr.bf16.mxu0 %v515
        %1024 = vmatpush1.bf16.msra.mxu0 %v514
        %1025 = vmatprep.subr.bf16.mxu0 %v513
        %1026 = vmatpush1.bf16.msra.mxu0 %v512
        %1027 = vmatprep.subr.bf16.mxu0 %v511
        %1028 = vmatpush1.bf16.msra.mxu0 %v510
        %1029 = vmatprep.subr.bf16.mxu0 %v509
        %1030 = vmatpush1.bf16.msra.mxu0 %v508
        %1031 = vmatprep.subr.bf16.mxu0 %v539
        %1032 = vmatpush2.bf16.msra.mxu0 %v538
        %1033 = vmatprep.subr.bf16.mxu0 %v537
        %1034 = vmatpush2.bf16.msra.mxu0 %v536
        %1035 = vmatprep.subr.bf16.mxu0 %v535
        %1036 = vmatpush2.bf16.msra.mxu0 %v534
        %1037 = vmatprep.subr.bf16.mxu0 %v533
        %1038 = vmatpush2.bf16.msra.mxu0 %v532
        %1039 = vmatprep.subr.bf16.mxu0 %v531
        %1040 = vmatpush2.bf16.msra.mxu0 %v530
        %1041 = vmatprep.subr.bf16.mxu0 %v529
        %1042 = vmatpush2.bf16.msra.mxu0 %v528
        %1043 = vmatprep.subr.bf16.mxu0 %v527
        %1044 = vmatpush2.bf16.msra.mxu0 %v526
        %1045 = vmatprep.subr.bf16.mxu0 %v525
        %1046 = vmatpush2.bf16.msra.mxu0 %v524
        %1047 = vmatprep.mubr.bf16.mxu0 %v929
        %1048 = vmatmul.mubr.bf16.gmra.mxu0 %v928
        %v1049 = vpop.f32.mrf.mxu0
        %v1050 = vadd.f32 %v977, %v1049
        %v1051 = vpop.f32.mrf.mxu0
        %v1052 = vadd.f32 %v979, %v1051
        %v1053 = vpop.f32.mrf.mxu0
        %v1054 = vadd.f32 %v981, %v1053
        %v1055 = vpop.f32.mrf.mxu0
        %v1056 = vadd.f32 %v983, %v1055
        %1057 = vmatprep.mubr.bf16.mxu0 %v933
        %1058 = vmatmul.mubr.bf16.gmra.mxu0 %v932
        %v1059 = vpop.f32.mrf.mxu0
        %v1060 = vadd.f32 %v987, %v1059
        %v1061 = vpop.f32.mrf.mxu0
        %v1062 = vadd.f32 %v989, %v1061
        %v1063 = vpop.f32.mrf.mxu0
        %v1064 = vadd.f32 %v991, %v1063
        %v1065 = vpop.f32.mrf.mxu0
        %v1066 = vadd.f32 %v993, %v1065
        %1067 = vmatprep.mubr.bf16.mxu0 %v937
        %1068 = vmatmul.mubr.bf16.gmra.mxu0 %v936
        %v1069 = vpop.f32.mrf.mxu0
        %v1070 = vadd.f32 %v997, %v1069
        %v1071 = vpop.f32.mrf.mxu0
        %v1072 = vadd.f32 %v999, %v1071
        %v1073 = vpop.f32.mrf.mxu0
        %v1074 = vadd.f32 %v1001, %v1073
        %v1075 = vpop.f32.mrf.mxu0
        %v1076 = vadd.f32 %v1003, %v1075
        %1077 = vmatprep.mubr.bf16.mxu0 %v941
        %1078 = vmatmul.mubr.bf16.gmra.mxu0 %v940
        %v1079 = vpop.f32.mrf.mxu0
        %v1080 = vadd.f32 %v1007, %v1079
        %v1081 = vpop.f32.mrf.mxu0
        %v1082 = vadd.f32 %v1009, %v1081
        %v1083 = vpop.f32.mrf.mxu0
        %v1084 = vadd.f32 %v1011, %v1083
        %v1085 = vpop.f32.mrf.mxu0
        %v1086 = vadd.f32 %v1013, %v1085
        %1087 = vdwg.mxu0
        %v1088 = vrcp.pop %v890
        %v1089 = vrcp.pop %v895
        %v1090 = vrcp.pop %v900
        %v1091 = vrcp.pop %v905
        %v1092 = vrcp.pop %v910
        %v1093 = vrcp.pop %v915
        %v1094 = vrcp.pop %v920
        %v1095 = vrcp.pop %v925
        %v1096 = vmul.f32 %v1050, %v1088
        %v1097 = vmul.f32 %v1052, %v1088
        %v1098 = vmul.f32 %v1054, %v1089
        %v1099 = vmul.f32 %v1056, %v1089
        %v1100 = vmul.f32 %v1060, %v1090
        %v1101 = vmul.f32 %v1062, %v1090
        %v1102 = vmul.f32 %v1064, %v1091
        %v1103 = vmul.f32 %v1066, %v1091
        %v1104 = vmul.f32 %v1070, %v1092
        %v1105 = vmul.f32 %v1072, %v1092
        %v1106 = vmul.f32 %v1074, %v1093
        %v1107 = vmul.f32 %v1076, %v1093
        %v1108 = vmul.f32 %v1080, %v1094
        %v1109 = vmul.f32 %v1082, %v1094
        %v1110 = vmul.f32 %v1084, %v1095
        %v1111 = vmul.f32 %v1086, %v1095
        %1112 = vst [vmem:[%s177] sm:$0xff] %v1096
        %1113 = vst [vmem:[%s177 + $0x8] sm:$0xff] %v1097
        %1114 = vst [vmem:[%s177 + $0x10] sm:$0xff] %v1098
        %1115 = vst [vmem:[%s177 + $0x18] sm:$0xff] %v1099
        %1116 = vst [vmem:[%s177 + $0x20] sm:$0xff] %v1100
        %1117 = vst [vmem:[%s177 + $0x28] sm:$0xff] %v1101
        %1118 = vst [vmem:[%s177 + $0x30] sm:$0xff] %v1102
        %1119 = vst [vmem:[%s177 + $0x38] sm:$0xff] %v1103
        %1120 = vst [vmem:[%s177 + $0x40] sm:$0xff] %v1104
        %1121 = vst [vmem:[%s177 + $0x48] sm:$0xff] %v1105
        %1122 = vst [vmem:[%s177 + $0x50] sm:$0xff] %v1106
        %1123 = vst [vmem:[%s177 + $0x58] sm:$0xff] %v1107
        %1124 = vst [vmem:[%s177 + $0x60] sm:$0xff] %v1108
        %1125 = vst [vmem:[%s177 + $0x68] sm:$0xff] %v1109
        %1126 = vst [vmem:[%s177 + $0x70] sm:$0xff] %v1110
        %1127 = vst [vmem:[%s177 + $0x78] sm:$0xff] %v1111
        %s1128 = sand.u32 %s75, 1
        %s1129 = scalar_lea.sflag [#allocation4], %s1128
        %s1130 = sand.u32 %s75, 1
        %s1131 = smul.addr %s1130, 128
        %s1132 = scalar_lea.vmem [#allocation7], %s1131
        // Predicated region
        $region37: #{tpu_custom_call.1} parent=27 // pred_check
          %p1133 = pneg %p85
        $region38: #{tpu_custom_call.1} parent=27 // pred_check_branch
          %1135 = sbr.rel (%p1133) target = $region40
        $region39: #{tpu_custom_call.1} parent=27 // pred_region
          %s1136 = smul.u32 8, %s20
          %s1138 = ssub.s32 2048, 2048
          %1139 = vsyncadd %s1129, %s1138
          %s1140 = smul.addr %s1136, 2
          %s1141 = smul.addr %s1140, 128
          %s1142 = scalar_lea.hbm %s2, %s1141
          %s1143 = sshll.u32 %s1132, 4
          %s1144 = int_to_ptr.vmem [resolvable:$true] %s1143
          %1149 = dma.vmem_to_hbm [thread:$0]  %s1144, 2048, %s1142, %s1129, 256, 256, 16
        $region40: #{tpu_custom_call.1} parent=27 // pred_fallthru
          _
      $region28: #{tpu_custom_call.1} parent=5 // pred_fallthru
        _
      %p1150 = scmp.le.s32.totalorder 2, %s15
      // Predicated region
      $region41: #{tpu_custom_call.1} parent=5 // pred_check
        %p1151 = pneg %p1150
      $region42: #{tpu_custom_call.1} parent=5 // pred_check_branch
        %1153 = sbr.rel (%p1151) target = $region44
      $region43: #{tpu_custom_call.1} parent=5 // pred_region
        %s1154 = ssub.s32 %s15, 2
        // Predicated region
        $region45: #{tpu_custom_call.1} parent=43 // pred_check
          %p1155 = pneg %p91
        $region46: #{tpu_custom_call.1} parent=43 // pred_check_branch
          %1157 = sbr.rel (%p1155) target = $region48
        $region47: #{tpu_custom_call.1} parent=43 // pred_region
          %s1158 = sand.u32 %s76, 1
          %s1159 = scalar_lea.sflag [#allocation4], %s1158
          %s1160 = sand.u32 %s76, 1
          %s1161 = smul.addr %s1160, 128
          %s1162 = scalar_lea.vmem [#allocation7], %s1161
          %1163 = dma.done %s1159, 2048
        $region48: #{tpu_custom_call.1} parent=43 // pred_fallthru
          _
      $region44: #{tpu_custom_call.1} parent=5 // pred_fallthru
        _
    $region6: #{tpu_custom_call.1} parent=1 // loop_footer
      %s19 = sadd.s32 1, %s15
    $region7: #{tpu_custom_call.1} parent=1 // loop_footer_branch
      %14 = sbr.rel target = $region3
    $region8: #{tpu_custom_call.1} parent=1 // loop_exit
      _
    %1164 = vsyncpa [#allocation3], 1
    %s1165 = scalar_lea.sflag [#allocation3], 1
    %1166 = vsyncpa %s1165, 1
    %1167 = vsyncpa [#allocation6], 1
    %1168 = vsyncpa [#allocation4], 1
    %s1169 = scalar_lea.sflag [#allocation4], 1
    %1170 = vsyncpa %s1169, 1

</llo_original>
